<compile_context>
chip_gen: v7x
topology: tpu7x:2x2x1
jax: 0.10.0
libtpu: 0.0.40
codegen_flags: <defaults>
</compile_context>

<pallas_src>
import jax
import jax.numpy as jnp
from jax.experimental import pallas as pl
from jax.experimental.pallas import tpu as pltpu


def _dma_copy_kernel(x_hbm, o_hbm, sem):
    # Single whole-array HBM->HBM DMA; no VMEM staging, no vector work.
    cp = pltpu.make_async_copy(x_hbm, o_hbm, sem)
    cp.start()
    cp.wait()


def _materialized_flatten(flat2d: jax.Array) -> jax.Array:
    """Identity-copy the flattened features via one HBM->HBM DMA."""
    n, d = flat2d.shape
    itemsize = jnp.dtype(flat2d.dtype).itemsize
    return pl.pallas_call(
        _dma_copy_kernel,
        out_shape=jax.ShapeDtypeStruct((n, d), flat2d.dtype),
        in_specs=[pl.BlockSpec(memory_space=pl.ANY)],
        out_specs=pl.BlockSpec(memory_space=pl.ANY),
        scratch_shapes=[pltpu.SemaphoreType.DMA(())],
        cost_estimate=pl.CostEstimate(
            flops=0,
            transcendentals=0,
            bytes_accessed=2 * n * d * itemsize,
        ),
    )(flat2d)


class Aggregator:
    """JAX/Pallas port of PatchCore Aggregator (forward is a flatten)."""

    def __init__(self, target_dim: int, use_pallas_copy: bool = True,
                 min_pallas_bytes: int = 256 * 1024):
        # target_dim is stored but unused by this forward (parity with torch).
        self.target_dim = target_dim
        self.use_pallas_copy = use_pallas_copy
        self.min_pallas_bytes = min_pallas_bytes

    def __call__(self, features: jax.Array) -> jax.Array:
        n = features.shape[0]
        # reshape(N, 1, -1).reshape(N, -1) == reshape(N, -1)
        flat = features.reshape(n, -1)
        if not self.use_pallas_copy:
            # Recommended production path: metadata-only view, no kernel.
            return flat
        nbytes = flat.size * jnp.dtype(flat.dtype).itemsize
        if nbytes < self.min_pallas_bytes:
            # Kernel-launch overhead dominates for sub-block-sized inputs.
            return flat
        return _materialized_flatten(flat)


if __name__ == "__main__":
    key = jax.random.PRNGKey(0)

    # Default instance: tiny inputs bypass the kernel (production behaviour).
    agg = Aggregator(target_dim=64)
    # Threshold of 0 forces the DMA kernel even for small test inputs.
    agg_force = Aggregator(target_dim=64, min_pallas_bytes=0)

    # Case 1: canonical small PatchCore-style feature map, through the kernel.
    N, C, H, W = 2, 4, 16, 16
    x = jax.random.normal(key, (N, C, H, W), dtype=jnp.float32)
    y = jax.block_until_ready(agg_force(x))
    ref = x.reshape(N, 1, -1).reshape(N, -1)
    assert y.shape == (N, C * H * W), y.shape
    assert y.dtype == x.dtype
    assert bool(jnp.array_equal(y, ref))

    # Case 2: large enough to take the kernel path under the default threshold.
    k2 = jax.random.PRNGKey(1)
    x2 = jax.random.normal(k2, (2, 64, 32, 32), dtype=jnp.float32)  # 512 KiB
    y2 = jax.block_until_ready(agg(x2))
    assert bool(jnp.array_equal(y2, x2.reshape(2, -1)))

    # Case 3: odd, non-128-multiple element count -- the whole-ref DMA handles
    # it natively (no padding, no trailing slice).
    k3 = jax.random.PRNGKey(2)
    x3 = jax.random.normal(k3, (2, 3, 5, 7), dtype=jnp.float32)
    y3 = jax.block_until_ready(agg_force(x3))
    assert bool(jnp.array_equal(y3, x3.reshape(2, -1)))

    # Case 4: tiny input through the default instance -> metadata-only flatten.
    y4 = jax.block_until_ready(agg(x))
    assert bool(jnp.array_equal(y4, ref))

    print("KERNEL_OK")
</pallas_src>

<mosaic_0001>
module attributes {stable_mosaic.version = 11 : i64} {
  func.func @_dma_copy_kernel(%arg0: memref<2x1024xf32, #tpu.memory_space<any>>, %arg1: memref<2x1024xf32, #tpu.memory_space<any>>, %arg2: memref<!tpu.dma_semaphore, #tpu.memory_space<semaphore_mem>>) attributes {dimension_semantics = [], scalar_prefetch = 0 : i64, scratch_operands = 1 : i64, tpu.core_type = #tpu.core_type<tc>} {
    tpu.enqueue_dma source(%arg0 : memref<2x1024xf32, #tpu.memory_space<any>>) target(%arg1 : memref<2x1024xf32, #tpu.memory_space<any>>) target_semaphore(%arg2 : memref<!tpu.dma_semaphore, #tpu.memory_space<semaphore_mem>>)
    tpu.wait_dma2 semaphore(%arg2 : memref<!tpu.dma_semaphore, #tpu.memory_space<semaphore_mem>>) src(%arg0 : memref<2x1024xf32, #tpu.memory_space<any>>) dst(%arg1 : memref<2x1024xf32, #tpu.memory_space<any>>)
    return
  }
}

</mosaic_0001>

<llo_original>
// kernel: tpu_custom_call.1
$region0: #{tpu_custom_call.1}
  #allocation0 [shape = 'u32[]', space=smem, size = 0x4, offset = 0x4, fixed_abs, tag = 'smem constant byte address 0x4 - core index']
  #allocation1 [shape = 'u32[144,128]{1,0:T(1,128)}', space=vmem, size = 0x12000, scoped, tag = 'internal scratch']
  #allocation2 [shape = 's32[1]{0}', space=sflag, size = 0x4, scoped, tag = 'scratch operand']
  #allocation3 [shape = 's32[]', space=sflag, size = 0x4, offset = 0, fixed_abs, tag = 'sflag constant byte address 0x0 - dummy sync flag']
  #allocation4 [shape = 'u32[0]{0}', space=smem, size = 0, offset = 0, fixed_abs, tag = 'smem constant byte address 0x0 - null']
  %s0 = inlined_call_operand.hbm [shape: f32[2,1024], index: 0, kind: input, shape index: {}]
  %s1 = inlined_call_operand.hbm [shape: f32[2,1024], index: 1, kind: output, shape index: {}]
  %s2 = sld [smem:[#allocation0]]
  $region2: #{tpu_custom_call.1} parent=0
    _
  %s4 = ssub.s32 1, %s2
  %s5 = scalar_select 0, %s4, %s2
  %s7 = sshll.u32 1, 14
  %s8 = sxor.u32 4294967295, %s7
  %s11 = sshll.u32 3, 24
  %s12 = sxor.u32 4294967295, %s11
  %s13 = sand.u32 0, %s12
  %s15 = sor.u32 %s13, 0
  %18 = dma.general %s0, 256, %s1, [#allocation2], [#allocation3], [#allocation4], %s15, 0
  %s19 = smul.u32 2, 1
  %s20 = smul.u32 %s19, 8
  %s21 = sshll.u32 %s20, 4
  %22 = dma.done [#allocation2], %s21
  %23 = vsyncmov [#allocation2]
  %s24 = vpop.sfrf %23
  %p25 = scmp.eq.s32.totalorder %s24, 0
  %p26 = pneg %p25
  %28 = shalt.err (%p26)

</llo_original>
